<compile_context>
chip_gen: v7x
topology: tpu7x:2x2x1
jax: 0.10.0
libtpu: 0.0.40
codegen_flags: <defaults>
</compile_context>

<pallas_src>
import numpy as np
import jax
import jax.numpy as jnp
from jax.experimental import pallas as pl
from jax.experimental.pallas import tpu as pltpu

N_CLASSES = 5
EXP = 2
STD = 0.5          # std of the gaussian label smoothing distribution
LAMBD = 10.0       # regularization weight
TILE_B_MAX = 2048  # lane-dense batch tile (multiple of 128); tiny VMEM footprint


# ----------------------------------------------------------------------------
# Deterministic "parameter" construction (mirrors CostSensitiveRegularizedLoss.__init__)
# ----------------------------------------------------------------------------
def _build_M(n_classes: int, exp: int) -> np.ndarray:
    x = np.abs(np.arange(n_classes, dtype=np.float32))
    M = np.abs(x[:, None] - x[None, :]) ** exp
    M /= M.max()
    if n_classes == 6:
        M[:, -1] = 0
        M[-1, :] = 0
    return M.astype(np.float32)


def _build_gaussian_dist(n_classes: int, std: float) -> np.ndarray:
    # Rows: scipy.stats.norm.pdf(range(n_classes), loc=n, scale=std) (not normalized).
    k = np.arange(n_classes, dtype=np.float64)
    rows = [
        (1.0 / (std * np.sqrt(2.0 * np.pi))) * np.exp(-0.5 * ((k - n) / std) ** 2)
        for n in range(n_classes)
    ]
    return np.stack(rows, axis=0).astype(np.float32)


# ----------------------------------------------------------------------------
# Pallas kernel: fused GLS cross-entropy + cost-sensitive regularizer.
# All refs are class-major (C, TILE_B); output is per-sample loss (1, TILE_B).
# ----------------------------------------------------------------------------
def _csr_loss_kernel(logits_ref, soft_ref, mrows_ref, out_ref):
    logits = logits_ref[...].astype(jnp.float32)   # (C, TILE_B)
    soft = soft_ref[...]                           # (C, TILE_B) = D[target].T
    mrows = mrows_ref[...]                         # (C, TILE_B) = (lambd*M)[target].T

    # log-softmax / softmax along the class (sublane) axis
    mx = jnp.max(logits, axis=0, keepdims=True)    # (1, TILE_B)
    shifted = logits - mx
    e = jnp.exp(shifted)
    denom = jnp.sum(e, axis=0, keepdims=True)      # (1, TILE_B)
    logp = shifted - jnp.log(denom)                # log_softmax(logits)
    probs = e * pl.reciprocal(denom, approx=True)  # softmax(logits), EUP reciprocal

    # per-sample losses (class-axis reductions, lane-dense result)
    base = jnp.sum(-logp * soft, axis=0, keepdims=True)   # GLS cross-entropy
    cs = jnp.sum(mrows * probs, axis=0, keepdims=True)    # lambd already folded into M
    out_ref[...] = base + cs


def cost_sensitive_regularized_loss(logits: jax.Array, target: jax.Array) -> jax.Array:
    """logits: (B, C) float (f32 or bf16), target: (B,) int32. Returns scalar f32 loss."""
    B, C = logits.shape

    D = jnp.asarray(_build_gaussian_dist(C, STD))
    Ml = jnp.asarray(_build_M(C, EXP)) * jnp.float32(LAMBD)   # pre-scale by lambd

    # Tiny XLA gathers replace the one-hot matmuls.
    soft = D[target].astype(jnp.float32)     # (B, C)
    mrows = Ml[target].astype(jnp.float32)   # (B, C)

    # Lane-dense batch tiling: pad B up to a multiple of TILE_B (>=128).
    tile_b = min(TILE_B_MAX, ((B + 127) // 128) * 128)
    b_pad = ((B + tile_b - 1) // tile_b) * tile_b
    pad = b_pad - B

    def _prep(x):
        # pad batch rows (zero soft-labels / cost rows => zero contribution),
        # then transpose so batch lands on the 128-wide lane axis.
        return jnp.pad(x, ((0, pad), (0, 0))).T   # (C, b_pad)

    logits_t = _prep(logits)     # kernel casts to f32 internally (bf16 stays bf16 in HBM)
    soft_t = _prep(soft)
    mrows_t = _prep(mrows)

    per_sample = pl.pallas_call(
        _csr_loss_kernel,
        out_shape=jax.ShapeDtypeStruct((1, b_pad), jnp.float32),
        grid_spec=pltpu.PrefetchScalarGridSpec(
            num_scalar_prefetch=0,
            grid=(b_pad // tile_b,),
            in_specs=[
                pl.BlockSpec((C, tile_b), lambda i: (0, i)),   # logits.T
                pl.BlockSpec((C, tile_b), lambda i: (0, i)),   # soft labels.T
                pl.BlockSpec((C, tile_b), lambda i: (0, i)),   # lambd*M rows.T
            ],
            out_specs=pl.BlockSpec((1, tile_b), lambda i: (0, i)),
        ),
        compiler_params=pltpu.CompilerParams(
            dimension_semantics=("parallel",),   # batch blocks independent -> 2 TCs on v7x
        ),
    )(logits_t, soft_t, mrows_t)

    # Single fold of the 1/B mean (padded rows contribute exactly 0).
    return jnp.sum(per_sample) / jnp.float32(B)


# ----------------------------------------------------------------------------
# Pure-JAX reference (mirrors the PyTorch forward semantics)
# ----------------------------------------------------------------------------
def _reference(logits, target):
    D = jnp.asarray(_build_gaussian_dist(N_CLASSES, STD))
    M = jnp.asarray(_build_M(N_CLASSES, EXP))
    logp = jax.nn.log_softmax(logits.astype(jnp.float32), axis=1)
    soft = D[target]
    base = jnp.mean(jnp.sum(-logp * soft, axis=1))
    p = jax.nn.softmax(logits.astype(jnp.float32), axis=1)
    cs = jnp.mean(jnp.sum(M[target] * p, axis=1))
    return base + LAMBD * cs


if __name__ == "__main__":
    key = jax.random.PRNGKey(0)
    k_logits, k_target = jax.random.split(key)
    B = 8
    logits = jax.random.normal(k_logits, (B, N_CLASSES), dtype=jnp.float32)
    target = jax.random.randint(k_target, (B,), 0, N_CLASSES, dtype=jnp.int32)

    loss = cost_sensitive_regularized_loss(logits, target)
    loss = jax.block_until_ready(loss)

    ref = jax.block_until_ready(_reference(logits, target))
    np.testing.assert_allclose(np.asarray(loss), np.asarray(ref), rtol=5e-3, atol=5e-3)

    print("KERNEL_OK")
</pallas_src>

<mosaic_0001>
module attributes {stable_mosaic.version = 11 : i64} {
  func.func @_csr_loss_kernel(%arg0: i32, %arg1: memref<5x128xf32, #tpu.memory_space<vmem>>, %arg2: memref<5x128xf32, #tpu.memory_space<vmem>>, %arg3: memref<5x128xf32, #tpu.memory_space<vmem>>, %arg4: memref<1x128xf32, #tpu.memory_space<vmem>>) attributes {dimension_semantics = [#tpu.dimension_semantics<parallel>], iteration_bounds = array<i64: 1>, scalar_prefetch = 0 : i64, scratch_operands = 0 : i64, tpu.core_type = #tpu.core_type<tc>, window_params = [{transform_indices = @transform_0, window_bounds = array<i64: 5, 128>}, {transform_indices = @transform_1, window_bounds = array<i64: 5, 128>}, {transform_indices = @transform_2, window_bounds = array<i64: 5, 128>}, {transform_indices = @transform_3, window_bounds = array<i64: 1, 128>}]} {
    %c0 = arith.constant 0 : index
    %c0_0 = arith.constant 0 : index
    %0 = vector.load %arg1[%c0, %c0_0] : memref<5x128xf32, #tpu.memory_space<vmem>>, vector<5x128xf32>
    %c0_1 = arith.constant 0 : index
    %c0_2 = arith.constant 0 : index
    %1 = vector.load %arg2[%c0_1, %c0_2] : memref<5x128xf32, #tpu.memory_space<vmem>>, vector<5x128xf32>
    %c0_3 = arith.constant 0 : index
    %c0_4 = arith.constant 0 : index
    %2 = vector.load %arg3[%c0_3, %c0_4] : memref<5x128xf32, #tpu.memory_space<vmem>>, vector<5x128xf32>
    %cst = arith.constant dense<0xFF800000> : vector<128xf32>
    %3 = vector.multi_reduction <maximumf>, %0, %cst [0] : vector<5x128xf32> to vector<128xf32>
    %4 = vector.shape_cast %3 : vector<128xf32> to vector<1x128xf32>
    %5 = vector.broadcast %4 : vector<1x128xf32> to vector<5x128xf32>
    %6 = arith.subf %0, %5 : vector<5x128xf32>
    %7 = math.exp %6 : vector<5x128xf32>
    %cst_5 = arith.constant dense<0.000000e+00> : vector<128xf32>
    %8 = vector.multi_reduction <add>, %7, %cst_5 [0] : vector<5x128xf32> to vector<128xf32>
    %9 = vector.shape_cast %8 : vector<128xf32> to vector<1x128xf32>
    %10 = math.log %9 : vector<1x128xf32>
    %11 = vector.broadcast %10 : vector<1x128xf32> to vector<5x128xf32>
    %12 = arith.subf %6, %11 : vector<5x128xf32>
    %13 = tpu.reciprocal %9 {approx = true} : vector<1x128xf32> -> vector<1x128xf32>
    %14 = vector.broadcast %13 : vector<1x128xf32> to vector<5x128xf32>
    %15 = arith.mulf %7, %14 : vector<5x128xf32>
    %cst_6 = arith.constant 0.000000e+00 : f32
    %16 = vector.broadcast %cst_6 : f32 to vector<5x128xf32>
    %17 = arith.subf %16, %12 : vector<5x128xf32>
    %18 = arith.mulf %17, %1 : vector<5x128xf32>
    %cst_7 = arith.constant dense<0.000000e+00> : vector<128xf32>
    %19 = vector.multi_reduction <add>, %18, %cst_7 [0] : vector<5x128xf32> to vector<128xf32>
    %20 = vector.shape_cast %19 : vector<128xf32> to vector<1x128xf32>
    %21 = arith.mulf %2, %15 : vector<5x128xf32>
    %cst_8 = arith.constant dense<0.000000e+00> : vector<128xf32>
    %22 = vector.multi_reduction <add>, %21, %cst_8 [0] : vector<5x128xf32> to vector<128xf32>
    %23 = vector.shape_cast %22 : vector<128xf32> to vector<1x128xf32>
    %24 = arith.addf %20, %23 : vector<1x128xf32>
    %c0_9 = arith.constant 0 : index
    %c0_10 = arith.constant 0 : index
    %25 = vector.load %arg4[%c0_9, %c0_10] : memref<1x128xf32, #tpu.memory_space<vmem>>, vector<1x128xf32>
    tpu.vector_store %arg4[%c0_9, %c0_10], %24 {strides = array<i32>} : memref<1x128xf32, #tpu.memory_space<vmem>>, vector<1x128xf32>,
    return
  }
  func.func @transform_0(%arg0: i32) -> (i32, i32) {
    %c0_i32 = arith.constant 0 : i32
    %c0_i32_0 = arith.constant 0 : i32
    return %c0_i32, %arg0 : i32, i32
  }
  func.func @transform_1(%arg0: i32) -> (i32, i32) {
    %c0_i32 = arith.constant 0 : i32
    %c0_i32_0 = arith.constant 0 : i32
    return %c0_i32, %arg0 : i32, i32
  }
  func.func @transform_2(%arg0: i32) -> (i32, i32) {
    %c0_i32 = arith.constant 0 : i32
    %c0_i32_0 = arith.constant 0 : i32
    return %c0_i32, %arg0 : i32, i32
  }
  func.func @transform_3(%arg0: i32) -> (i32, i32) {
    %c0_i32 = arith.constant 0 : i32
    %c0_i32_0 = arith.constant 0 : i32
    return %c0_i32, %arg0 : i32, i32
  }
}

</mosaic_0001>

<llo_original>
// kernel: tpu_custom_call.1
$region0: #{tpu_custom_call.1}
  #allocation0 [shape = 'u32[]', space=smem, size = 0x4, offset = 0x4, fixed_abs, tag = 'smem constant byte address 0x4 - core index']
  #allocation1 [shape = 'u32[144,128]{1,0:T(1,128)}', space=vmem, size = 0x12000, scoped, tag = 'internal scratch']
  %s0 = inlined_call_operand.hbm [shape: f32[5,128], index: 0, kind: input, shape index: {}]
  %s1 = inlined_call_operand.hbm [shape: f32[5,128], index: 1, kind: input, shape index: {}]
  %s2 = inlined_call_operand.hbm [shape: f32[5,128], index: 2, kind: input, shape index: {}]
  %s3 = inlined_call_operand.hbm [shape: f32[1,128], index: 3, kind: output, shape index: {}]
  %s4 = sld [smem:[#allocation0]]
  $region34: #{tpu_custom_call.1} parent=0
    _
  %s6 = ssub.s32 1, %s4
  %s7 = scalar_select 0, %s6, %s4
  $region1: #{tpu_custom_call.1} parent=0
    #allocation2 [shape = 'u8[4096]{0}', space=vmem, size = 0x1000, scoped, tag = 'input window, operand 0, single buffered']
    #allocation3 [shape = 's32[1]{0}', space=sflag, size = 0x4, scoped, tag = 'scoped memory for tpu_custom_call.1']
    #allocation4 [shape = 's32[1]{0}', space=sflag, size = 0x4, scoped, tag = 'scoped memory for tpu_custom_call.1']
    #allocation5 [shape = 'u8[4096]{0}', space=vmem, size = 0x1000, scoped, tag = 'input window, operand 1, single buffered']
    #allocation6 [shape = 's32[1]{0}', space=sflag, size = 0x4, scoped, tag = 'scoped memory for tpu_custom_call.1']
    #allocation7 [shape = 'u8[4096]{0}', space=vmem, size = 0x1000, scoped, tag = 'input window, operand 2, single buffered']
    #allocation8 [shape = 'u8[512]{0}', space=vmem, size = 0x400, scoped, tag = 'output window, operand 0, single buffered']
    %8 = vsyncpa [#allocation3], 0
    %9 = vsyncpa [#allocation6], 0
    %10 = vsyncpa [#allocation4], 0
    // Predicated region
    $region2: #{tpu_custom_call.1} parent=1 // pred_check
      _
    $region3: #{tpu_custom_call.1} parent=1 // pred_check_branch
      %12 = sbr.rel (0) target = $region5
    $region4: #{tpu_custom_call.1} parent=1 // pred_region
      %s14 = ssub.s32 128, 128
      %15 = vsyncadd [#allocation3], %s14
      %s17 = sshll.u32 [#allocation2], 4
      %s18 = int_to_ptr.vmem [resolvable:$true] %s17
      %20 = dma.hbm_to_vmem [thread:$0]  %s0, 128, %s18, [#allocation3]
    $region5: #{tpu_custom_call.1} parent=1 // pred_fallthru
      _
    // Predicated region
    $region6: #{tpu_custom_call.1} parent=1 // pred_check
      _
    $region7: #{tpu_custom_call.1} parent=1 // pred_check_branch
      %22 = sbr.rel (0) target = $region9
    $region8: #{tpu_custom_call.1} parent=1 // pred_region
      %s24 = ssub.s32 128, 128
      %25 = vsyncadd [#allocation6], %s24
      %s27 = sshll.u32 [#allocation5], 4
      %s28 = int_to_ptr.vmem [resolvable:$true] %s27
      %30 = dma.hbm_to_vmem [thread:$0]  %s1, 128, %s28, [#allocation6]
    $region9: #{tpu_custom_call.1} parent=1 // pred_fallthru
      _
    // Predicated region
    $region10: #{tpu_custom_call.1} parent=1 // pred_check
      _
    $region11: #{tpu_custom_call.1} parent=1 // pred_check_branch
      %32 = sbr.rel (0) target = $region13
    $region12: #{tpu_custom_call.1} parent=1 // pred_region
      %s34 = ssub.s32 128, 128
      %35 = vsyncadd [#allocation6], %s34
      %s37 = sshll.u32 [#allocation7], 4
      %s38 = int_to_ptr.vmem [resolvable:$true] %s37
      %40 = dma.hbm_to_vmem [thread:$0]  %s2, 128, %s38, [#allocation6]
    $region13: #{tpu_custom_call.1} parent=1 // pred_fallthru
      _
    // Predicated region
    $region14: #{tpu_custom_call.1} parent=1 // pred_check
      _
    $region15: #{tpu_custom_call.1} parent=1 // pred_check_branch
      %42 = sbr.rel (0) target = $region17
    $region16: #{tpu_custom_call.1} parent=1 // pred_region
      %43 = dma.done [#allocation3], 128
    $region17: #{tpu_custom_call.1} parent=1 // pred_fallthru
      _
    // Predicated region
    $region18: #{tpu_custom_call.1} parent=1 // pred_check
      _
    $region19: #{tpu_custom_call.1} parent=1 // pred_check_branch
      %45 = sbr.rel (0) target = $region21
    $region20: #{tpu_custom_call.1} parent=1 // pred_region
      %46 = dma.done [#allocation6], 128
    $region21: #{tpu_custom_call.1} parent=1 // pred_fallthru
      _
    // Predicated region
    $region22: #{tpu_custom_call.1} parent=1 // pred_check
      _
    $region23: #{tpu_custom_call.1} parent=1 // pred_check_branch
      %48 = sbr.rel (0) target = $region25
    $region24: #{tpu_custom_call.1} parent=1 // pred_region
      %49 = dma.done [#allocation6], 128
    $region25: #{tpu_custom_call.1} parent=1 // pred_fallthru
      _
    %v50 = vld [vmem:[#allocation2] sm:$0x1f]
    %v51 = vld [vmem:[#allocation5] sm:$0x1f]
    %v52 = vld [vmem:[#allocation7] sm:$0x1f]
    %vm53 = vcmask 1044480
    %v54 = vsel %vm53, %v50, -inf
    %v55 = vrot.slane %v54, 4
    %v56 = vmax.f32 %v54, %v55
    %v57 = vrot.slane %v56, 2
    %v58 = vmax.f32 %v56, %v57
    %v59 = vrot.slane %v58, 1
    %v60 = vmax.f32 %v58, %v59
    %v61 = vsub.f32 %v50, %v60
    %v62 = vmul.f32 %v61, 1.442695
    %v63 = vpow.pop %v62
    %v64 = vsel %vm53, %v63, 0.0
    %v65 = vrot.slane %v64, 4
    %v66 = vadd.f32 %v64, %v65
    %v67 = vrot.slane %v66, 2
    %v68 = vadd.f32 %v66, %v67
    %v69 = vrot.slane %v68, 1
    %v70 = vadd.f32 %v68, %v69
    %v71 = vlog2.pop %v70
    %v72 = vmul.f32 %v71, 0.6931472
    %v73 = vsub.f32 %v61, %v72
    %v74 = vrcp.pop %v70
    %v75 = vmul.f32 %v63, %v74
    %v76 = vsub.f32 0.0, %v73
    %v77 = vmul.f32 %v76, %v51
    %v78 = vsel %vm53, %v77, 0.0
    %v79 = vrot.slane %v78, 4
    %v80 = vadd.f32 %v78, %v79
    %v81 = vrot.slane %v80, 2
    %v82 = vadd.f32 %v80, %v81
    %v83 = vrot.slane %v82, 1
    %v84 = vadd.f32 %v82, %v83
    %v85 = vmul.f32 %v52, %v75
    %v86 = vsel %vm53, %v85, 0.0
    %v87 = vrot.slane %v86, 4
    %v88 = vadd.f32 %v86, %v87
    %v89 = vrot.slane %v88, 2
    %v90 = vadd.f32 %v88, %v89
    %v91 = vrot.slane %v90, 1
    %v92 = vadd.f32 %v90, %v91
    %v93 = vadd.f32 %v84, %v92
    %94 = vst [vmem:[#allocation8] sm:$0x1] %v93
    // Predicated region
    $region26: #{tpu_custom_call.1} parent=1 // pred_check
      _
    $region27: #{tpu_custom_call.1} parent=1 // pred_check_branch
      %96 = sbr.rel (0) target = $region29
    $region28: #{tpu_custom_call.1} parent=1 // pred_region
      %s98 = ssub.s32 16, 16
      %99 = vsyncadd [#allocation4], %s98
      %s101 = sshll.u32 [#allocation8], 4
      %s102 = int_to_ptr.vmem [resolvable:$true] %s101
      %104 = dma.vmem_to_hbm [thread:$0]  %s102, 16, %s3, [#allocation4]
    $region29: #{tpu_custom_call.1} parent=1 // pred_fallthru
      _
    // Predicated region
    $region30: #{tpu_custom_call.1} parent=1 // pred_check
      _
    $region31: #{tpu_custom_call.1} parent=1 // pred_check_branch
      %106 = sbr.rel (0) target = $region33
    $region32: #{tpu_custom_call.1} parent=1 // pred_region
      %107 = dma.done [#allocation4], 16
    $region33: #{tpu_custom_call.1} parent=1 // pred_fallthru
      _
    %108 = vsyncpa [#allocation3], 1
    %109 = vsyncpa [#allocation6], 1
    %110 = vsyncpa [#allocation4], 1

</llo_original>
